<compile_context>
chip_gen: v7x
topology: tpu7x:2x2x1
jax: 0.10.0
libtpu: 0.0.40
codegen_flags: <defaults>
</compile_context>

<pallas_src>
import functools
import math

import jax
import jax.numpy as jnp
from jax.experimental import pallas as pl
from jax.experimental.pallas import tpu as pltpu


# Finite "minus infinity": keeps the online softmax free of inf-inf NaNs.
_NEG_INF = -1e30


def _pick_tile(n, target, align):
    """Largest `align`-aligned divisor of n that is <= target (else full dim).

    Both outcomes satisfy the TPU (8,128) block constraint: aligned divisors by
    construction, the full dimension trivially.  Divisor tiles keep the grids
    exact so the kernels need no remainder masking.
    """
    if n <= target:
        return n
    t = (target // align) * align
    while t >= align:
        if n % t == 0:
            return t
        t -= align
    # TODO(synk): dims with no aligned divisor fall back to the full extent; a
    # cdiv grid with masked remainders would bound VMEM for odd dims on v7x.
    return n


# --------------------------- Tiled linear (matmul) ---------------------------

def _matmul_kernel(x_ref, w_ref, o_ref, acc_ref):
    # K axis is the last grid axis ("arbitrary"); accumulate in f32 scratch.
    @pl.when(pl.program_id(2) == 0)
    def _():
        acc_ref[...] = jnp.zeros_like(acc_ref)

    acc_ref[...] += jnp.dot(
        x_ref[...], w_ref[...], preferred_element_type=jnp.float32
    )

    @pl.when(pl.program_id(2) == pl.num_programs(2) - 1)
    def _():
        o_ref[...] = acc_ref[...].astype(o_ref.dtype)


def _pallas_matmul(x2d, w, *, out_dtype=None, tm=512, tn=1024, tk=1024):
    """y = x2d @ w with x2d:(M,K), w:(K,N); tiled, pipelined, f32 accumulation.

    Default tiles (512/1024/1024) at bf16 are ~10 MiB double-buffered, inside
    the 32 MiB scoped-VMEM default of every generation (incl. v7x's 64 MiB
    physical VMEM); for llama-sized M/N this also leaves >=2 blocks per
    parallel axis so both v7x TensorCores get work.
    """
    M, K = x2d.shape
    K2, N = w.shape
    assert K == K2
    if out_dtype is None:
        out_dtype = x2d.dtype
    tm = _pick_tile(M, tm, 8)
    tn = _pick_tile(N, tn, 128)
    tk = _pick_tile(K, tk, 128)
    grid = (M // tm, N // tn, K // tk)
    return pl.pallas_call(
        _matmul_kernel,
        out_shape=jax.ShapeDtypeStruct((M, N), out_dtype),
        grid_spec=pltpu.PrefetchScalarGridSpec(
            num_scalar_prefetch=0,
            grid=grid,
            in_specs=[
                pl.BlockSpec((tm, tk), lambda i, j, k: (i, k)),
                pl.BlockSpec((tk, tn), lambda i, j, k: (k, j)),
            ],
            out_specs=pl.BlockSpec((tm, tn), lambda i, j, k: (i, j)),
            scratch_shapes=[pltpu.VMEM((tm, tn), jnp.float32)],
        ),
        compiler_params=pltpu.CompilerParams(
            dimension_semantics=("parallel", "parallel", "arbitrary")
        ),
    )(x2d, w)


# ------------------------- Flash attention (SDPA) ----------------------------

def _flash_attn_kernel(q_ref, k_ref, v_ref, o_ref, m_sc, l_sc, acc_sc, *,
                       causal, n_pack, head_dim):
    """Online-softmax attention for one (batch, kv-group, q-tile) over KV tiles.

    q_ref/o_ref: (tq, n_pack*head_dim)  -- n_pack query heads sharing one KV
    head are packed lane-contiguously.  k_ref/v_ref: (tkv, head_dim).
    Scratch: m/l (n_pack, tq, 1) f32, acc (tq, n_pack*head_dim) f32.
    Grid is (B, Hkv, nQ, nK); the KV axis is last ("arbitrary").
    The 1/sqrt(head_dim) scale is already folded into the Q projection.
    """
    qi = pl.program_id(2)
    ki = pl.program_id(3)
    tq = q_ref.shape[0]
    tkv = k_ref.shape[0]

    @pl.when(ki == 0)
    def _():
        m_sc[...] = jnp.full(m_sc.shape, _NEG_INF, dtype=m_sc.dtype)
        l_sc[...] = jnp.zeros_like(l_sc)
        acc_sc[...] = jnp.zeros_like(acc_sc)

    def _compute(masked):
        k = k_ref[...]                      # bf16 straight into the MXU
        v = v_ref[...]
        if masked:
            # Mask built once per block and shared by all packed heads.
            row = qi * tq + jax.lax.broadcasted_iota(jnp.int32, (tq, tkv), 0)
            col = ki * tkv + jax.lax.broadcasted_iota(jnp.int32, (tq, tkv), 1)
            keep = col <= row
        for hh in range(n_pack):
            lo, hi = hh * head_dim, (hh + 1) * head_dim
            q = q_ref[:, lo:hi]
            # QK^T: contract last dims of both operands (no k.T relayout).
            s = jax.lax.dot_general(
                q, k, dimension_numbers=(((1,), (1,)), ((), ())),
                preferred_element_type=jnp.float32)
            if masked:
                s = jnp.where(keep, s, _NEG_INF)
            m_prev = m_sc[hh]
            m_new = jnp.maximum(m_prev, jnp.max(s, axis=-1, keepdims=True))
            alpha = jnp.exp(m_prev - m_new)
            p = jnp.exp(s - m_new)
            l_sc[hh] = alpha * l_sc[hh] + jnp.sum(p, axis=-1, keepdims=True)
            acc_sc[:, lo:hi] = alpha * acc_sc[:, lo:hi] + jnp.dot(
                p.astype(v.dtype), v, preferred_element_type=jnp.float32)
            m_sc[hh] = m_new

    if causal:
        # Block row range [qi*tq, (qi+1)*tq), col range [ki*tkv, (ki+1)*tkv).
        # Safe online-softmax ordering: ki ascends from 0 and block ki=0 always
        # contains column 0, which is never masked, so m/l are real before any
        # fully-masked row can appear in a later block.
        no_mask = (ki + 1) * tkv - 1 <= qi * tq          # fully at/below diag
        skip = ki * tkv >= (qi + 1) * tq                 # fully above diag
        straddle = jnp.logical_and(jnp.logical_not(no_mask),
                                   jnp.logical_not(skip))
        pl.when(no_mask)(lambda: _compute(False))        # no VPU mask cost
        pl.when(straddle)(lambda: _compute(True))
    else:
        _compute(False)

    @pl.when(ki == pl.num_programs(3) - 1)
    def _():
        for hh in range(n_pack):
            lo, hi = hh * head_dim, (hh + 1) * head_dim
            inv = 1.0 / l_sc[hh]             # exact division (accuracy fix)
            o_ref[:, lo:hi] = (acc_sc[:, lo:hi] * inv).astype(o_ref.dtype)


def _flash_sdpa_folded(qkv2d, *, B, S, H, Hkv, Dh, causal, tq=512, tkv=256):
    """Transpose-free path: Q/K/V are read directly from the fused
    (B*S, (H+2*Hkv)*Dh) projection output and O is written as (B*S, H*Dh).
    Requires Dh % 128 == 0 and S % 8 == 0 (lane/sublane alignment).
    """
    n_rep = H // Hkv
    tq = _pick_tile(S, tq, 8)
    tkv = _pick_tile(S, tkv, 8)
    nQ, nK = S // tq, S // tkv
    kernel = functools.partial(_flash_attn_kernel, causal=causal,
                               n_pack=n_rep, head_dim=Dh)

    if causal:
        def kv_row(b, qi, ki):
            # Clamp at the diagonal: fully-masked steps repeat the previous
            # block index so Pallas skips the K/V re-DMA entirely.
            return b * nK + jnp.minimum(ki, ((qi + 1) * tq - 1) // tkv)
    else:
        def kv_row(b, qi, ki):
            return b * nK + ki

    q_spec = pl.BlockSpec((tq, n_rep * Dh),
                          lambda b, g, qi, ki: (b * nQ + qi, g))
    k_spec = pl.BlockSpec((tkv, Dh),
                          lambda b, g, qi, ki: (kv_row(b, qi, ki), H + g))
    v_spec = pl.BlockSpec((tkv, Dh),
                          lambda b, g, qi, ki: (kv_row(b, qi, ki), H + Hkv + g))
    o_spec = pl.BlockSpec((tq, n_rep * Dh),
                          lambda b, g, qi, ki: (b * nQ + qi, g))

    return pl.pallas_call(
        kernel,
        out_shape=jax.ShapeDtypeStruct((B * S, H * Dh), qkv2d.dtype),
        grid_spec=pltpu.PrefetchScalarGridSpec(
            num_scalar_prefetch=0,
            grid=(B, Hkv, nQ, nK),
            in_specs=[q_spec, k_spec, v_spec],
            out_specs=o_spec,
            scratch_shapes=[
                pltpu.VMEM((n_rep, tq, 1), jnp.float32),      # running max
                pltpu.VMEM((n_rep, tq, 1), jnp.float32),      # running sum
                pltpu.VMEM((tq, n_rep * Dh), jnp.float32),    # output accum
            ],
        ),
        compiler_params=pltpu.CompilerParams(
            dimension_semantics=("parallel", "parallel", "parallel",
                                 "arbitrary")
        ),
    )(qkv2d, qkv2d, qkv2d)


def _flash_sdpa_bhsd(q, k, v, *, causal, tq=512, tkv=256):
    """General fallback path on (B, H, S, Dh) tensors (any head_dim)."""
    B, H, S, Dh = q.shape
    Hkv = k.shape[1]
    n_rep = H // Hkv
    tq = _pick_tile(S, tq, 8)
    tkv = _pick_tile(S, tkv, 8)
    nQ, nK = S // tq, S // tkv
    kernel = functools.partial(_flash_attn_kernel, causal=causal,
                               n_pack=1, head_dim=Dh)

    if causal:
        def kv_blk(qi, ki):
            return jnp.minimum(ki, ((qi + 1) * tq - 1) // tkv)
    else:
        def kv_blk(qi, ki):
            return ki

    q_spec = pl.BlockSpec((None, None, tq, Dh),
                          lambda b, h, qi, ki: (b, h, qi, 0))
    k_spec = pl.BlockSpec((None, None, tkv, Dh),
                          lambda b, h, qi, ki: (b, h // n_rep, kv_blk(qi, ki), 0))
    v_spec = pl.BlockSpec((None, None, tkv, Dh),
                          lambda b, h, qi, ki: (b, h // n_rep, kv_blk(qi, ki), 0))
    o_spec = pl.BlockSpec((None, None, tq, Dh),
                          lambda b, h, qi, ki: (b, h, qi, 0))

    return pl.pallas_call(
        kernel,
        out_shape=jax.ShapeDtypeStruct((B, H, S, Dh), q.dtype),
        grid_spec=pltpu.PrefetchScalarGridSpec(
            num_scalar_prefetch=0,
            grid=(B, H, nQ, nK),
            in_specs=[q_spec, k_spec, v_spec],
            out_specs=o_spec,
            scratch_shapes=[
                pltpu.VMEM((1, tq, 1), jnp.float32),
                pltpu.VMEM((1, tq, 1), jnp.float32),
                pltpu.VMEM((tq, Dh), jnp.float32),
            ],
        ),
        compiler_params=pltpu.CompilerParams(
            dimension_semantics=("parallel", "parallel", "parallel",
                                 "arbitrary")
        ),
    )(q, k, v)


# ------------------------------ Attention op ---------------------------------

def prepare_params(params, n_heads, compute_dtype=jnp.bfloat16):
    """One-time weight prep (at model init, NOT per forward):
      * fuse [wq | wk | wv] so x is streamed from HBM once per QKV projection,
      * fold the 1/sqrt(head_dim) attention scale into the wq columns (removes
        a per-step (tq,tkv) VPU multiply from the flash inner loop),
      * cast to bf16 for full-rate MXU and halved HBM/VMEM traffic.
    """
    dim = params["wq"].shape[0]
    head_dim = dim // n_heads
    scale = 1.0 / math.sqrt(head_dim)
    w_qkv = jnp.concatenate(
        [params["wq"] * scale, params["wk"], params["wv"]], axis=1)
    return {"w_qkv": w_qkv.astype(compute_dtype),
            "wo": params["wo"].astype(compute_dtype)}


def attention_forward(x, start_pos, freqs_cis, mask, kparams, n_heads,
                      n_kv_heads):
    """Forward pass of the Attention module.

    x: (bsz, seqlen, dim); kparams: output of prepare_params().
    freqs_cis / start_pos: unused (matches the reference forward -> no RoPE).
    mask: used only as an is_causal flag, exactly like the reference's SDPA.
    """
    del start_pos, freqs_cis  # intentionally unused (reference applies no RoPE)
    B, S, dim = x.shape
    H, Hkv = n_heads, n_kv_heads
    Dh = dim // H
    causal = mask is not None  # TODO(synk): additive mask contents are ignored
    #                            (reference passes is_causal only).

    w_qkv = kparams["w_qkv"]          # (dim, (H+2*Hkv)*Dh), bf16, scale folded
    wo = kparams["wo"]                # (H*Dh, dim), bf16
    compute_dtype = w_qkv.dtype

    # Fused QKV projection: x read from HBM once against [wq | wk | wv].
    x2d = x.reshape(B * S, dim).astype(compute_dtype)
    qkv2d = _pallas_matmul(x2d, w_qkv, out_dtype=compute_dtype)

    if Dh % 128 == 0 and S % 8 == 0:
        # Layout-folded path: zero transposes / reshape copies around SDPA.
        o2d = _flash_sdpa_folded(qkv2d, B=B, S=S, H=H, Hkv=Hkv, Dh=Dh,
                                 causal=causal)
    else:
        # General path: explicit (B, H, S, Dh) layout, still flash attention.
        # TODO(synk): fold these relayouts into the attention / wo BlockSpecs.
        nq_c, nk_c = H * Dh, Hkv * Dh
        q = jnp.transpose(qkv2d[:, :nq_c].reshape(B, S, H, Dh), (0, 2, 1, 3))
        k = jnp.transpose(
            qkv2d[:, nq_c:nq_c + nk_c].reshape(B, S, Hkv, Dh), (0, 2, 1, 3))
        v = jnp.transpose(
            qkv2d[:, nq_c + nk_c:].reshape(B, S, Hkv, Dh), (0, 2, 1, 3))
        o = _flash_sdpa_bhsd(q, k, v, causal=causal)
        o2d = jnp.transpose(o, (0, 2, 1, 3)).reshape(B * S, H * Dh)

    out2d = _pallas_matmul(o2d, wo, out_dtype=x.dtype)
    return out2d.reshape(B, S, dim)


# -------------------------------- Reference ----------------------------------

def attention_reference(x, mask, params, n_heads, n_kv_heads):
    """Pure-f32 jnp reference mirroring the PyTorch module."""
    bsz, seqlen, dim = x.shape
    head_dim = dim // n_heads
    n_rep = n_heads // n_kv_heads

    xq = (x @ params["wq"]).reshape(bsz, seqlen, n_heads, head_dim)
    xk = (x @ params["wk"]).reshape(bsz, seqlen, n_kv_heads, head_dim)
    xv = (x @ params["wv"]).reshape(bsz, seqlen, n_kv_heads, head_dim)

    keys = jnp.repeat(xk, n_rep, axis=2)
    values = jnp.repeat(xv, n_rep, axis=2)

    q = jnp.transpose(xq, (0, 2, 1, 3))
    k = jnp.transpose(keys, (0, 2, 1, 3))
    v = jnp.transpose(values, (0, 2, 1, 3))

    s = jnp.einsum("bhqd,bhkd->bhqk", q, k) / math.sqrt(head_dim)
    if mask is not None:
        tri = jnp.tril(jnp.ones((seqlen, seqlen), dtype=bool))
        s = jnp.where(tri[None, None], s, -jnp.inf)
    p = jax.nn.softmax(s, axis=-1)
    o = jnp.einsum("bhqk,bhkd->bhqd", p, v)
    o = jnp.transpose(o, (0, 2, 1, 3)).reshape(bsz, seqlen, -1)
    return o @ params["wo"]


# ----------------------------------- Main -------------------------------------

if __name__ == "__main__":
    base_key = jax.random.PRNGKey(0)

    # --- Unit check 1: tiled matmul with K-axis accumulation (bf16 operands).
    ka, kb = jax.random.split(jax.random.fold_in(base_key, 100))
    a = jax.random.normal(ka, (64, 256), jnp.float32).astype(jnp.bfloat16)
    b = jax.random.normal(kb, (256, 128), jnp.float32).astype(jnp.bfloat16)
    c = jax.block_until_ready(
        _pallas_matmul(a, b, out_dtype=jnp.float32, tm=32, tn=128, tk=128))
    c_ref = a.astype(jnp.float32) @ b.astype(jnp.float32)
    assert jnp.allclose(c, c_ref, rtol=1e-3, atol=1e-2), float(
        jnp.max(jnp.abs(c - c_ref)))

    # --- Unit check 2: multi-tile causal flash attention with GQA packing and
    #     tkv < tq (exercises masked/unmasked/skip branches and the clamped
    #     K/V index_map).
    S_u, Dh_u, Hkv_u, n_rep_u = 32, 128, 1, 2
    H_u = Hkv_u * n_rep_u
    kq_u = jax.random.fold_in(base_key, 101)
    qkv_u = (0.25 * jax.random.normal(
        kq_u, (S_u, (H_u + 2 * Hkv_u) * Dh_u), jnp.float32)).astype(jnp.bfloat16)
    o_u = jax.block_until_ready(
        _flash_sdpa_folded(qkv_u, B=1, S=S_u, H=H_u, Hkv=Hkv_u, Dh=Dh_u,
                           causal=True, tq=16, tkv=8))
    qf = qkv_u.astype(jnp.float32)
    q_u = qf[:, :H_u * Dh_u].reshape(S_u, H_u, Dh_u)
    k_u = qf[:, H_u * Dh_u:(H_u + Hkv_u) * Dh_u].reshape(S_u, Hkv_u, Dh_u)
    v_u = qf[:, (H_u + Hkv_u) * Dh_u:].reshape(S_u, Hkv_u, Dh_u)
    tri_u = jnp.tril(jnp.ones((S_u, S_u), bool))
    o_parts = []
    for h in range(H_u):
        s_u = q_u[:, h] @ k_u[:, h // n_rep_u].T   # scale already folded in q
        s_u = jnp.where(tri_u, s_u, -jnp.inf)
        o_parts.append(jax.nn.softmax(s_u, axis=-1) @ v_u[:, h // n_rep_u])
    o_ref_u = jnp.concatenate(o_parts, axis=-1)
    rel_u = float(jnp.linalg.norm(o_u.astype(jnp.float32) - o_ref_u)
                  / (jnp.linalg.norm(o_ref_u) + 1e-12))
    assert rel_u < 2e-2, rel_u

    # --- End-to-end Attention forward vs. f32 reference.
    def run_case(case_id, *, bsz, seqlen, dim, n_heads, n_kv_heads, causal):
        head_dim = dim // n_heads
        key = jax.random.fold_in(base_key, case_id)
        kx, kqw, kkw, kvw, kow = jax.random.split(key, 5)
        x = jax.random.normal(kx, (bsz, seqlen, dim), dtype=jnp.float32)
        sc = 0.05
        params = {
            "wq": sc * jax.random.normal(kqw, (dim, n_heads * head_dim), jnp.float32),
            "wk": sc * jax.random.normal(kkw, (dim, n_kv_heads * head_dim), jnp.float32),
            "wv": sc * jax.random.normal(kvw, (dim, n_kv_heads * head_dim), jnp.float32),
            "wo": sc * jax.random.normal(kow, (n_heads * head_dim, dim), jnp.float32),
        }
        kparams = prepare_params(params, n_heads)   # once, outside jit
        # freqs_cis is unused by the reference forward; placeholder only.
        freqs_cis = jnp.zeros((seqlen, max(head_dim // 2, 1)), jnp.complex64)
        mask = jnp.zeros((seqlen, seqlen), jnp.float32) if causal else None

        fwd = jax.jit(attention_forward, static_argnums=(1, 5, 6))
        out = jax.block_until_ready(
            fwd(x, 0, freqs_cis, mask, kparams, n_heads, n_kv_heads))

        ref = attention_reference(x, mask, params, n_heads, n_kv_heads)
        assert out.shape == (bsz, seqlen, dim)
        # bf16 MXU operands + bf16 qkv/o intermediates vs an f32 reference:
        # expect ~1-2% relative error; a structural bug would be O(100%).
        rel = float(jnp.linalg.norm(out - ref) / (jnp.linalg.norm(ref) + 1e-12))
        assert rel < 5e-2, rel

    # Case 1: head_dim=128 -> transpose-free folded path, causal, GQA n_rep=2.
    run_case(0, bsz=2, seqlen=8, dim=256, n_heads=2, n_kv_heads=1, causal=True)
    # Case 2: head_dim=32 -> (B,H,S,Dh) fallback path, non-causal, GQA n_rep=2.
    run_case(1, bsz=2, seqlen=16, dim=128, n_heads=4, n_kv_heads=2, causal=False)

    print("KERNEL_OK")
</pallas_src>

<mosaic_0001>
module attributes {stable_mosaic.version = 11 : i64} {
  func.func @_matmul_kernel(%arg0: i32, %arg1: i32, %arg2: i32, %arg3: memref<32x128xbf16, #tpu.memory_space<vmem>>, %arg4: memref<128x128xbf16, #tpu.memory_space<vmem>>, %arg5: memref<32x128xf32, #tpu.memory_space<vmem>>, %arg6: memref<32x128xf32, #tpu.memory_space<vmem>>) attributes {dimension_semantics = [#tpu.dimension_semantics<parallel>, #tpu.dimension_semantics<parallel>, #tpu.dimension_semantics<arbitrary>], iteration_bounds = array<i64: 2, 1, 2>, scalar_prefetch = 0 : i64, scratch_operands = 1 : i64, tpu.core_type = #tpu.core_type<tc>, window_params = [{transform_indices = @transform_0, window_bounds = array<i64: 32, 128>}, {transform_indices = @transform_1, window_bounds = array<i64: 128, 128>}, {transform_indices = @transform_2, window_bounds = array<i64: 32, 128>}]} {
    %c0_i32 = arith.constant 0 : i32
    %0 = arith.cmpi eq, %arg2, %c0_i32 : i32
    %1 = arith.extui %0 : i1 to i32
    %c0_i32_0 = arith.constant 0 : i32
    %2 = arith.cmpi ne, %1, %c0_i32_0 : i32
    scf.if %2 {
      %cst_9 = arith.constant 0.000000e+00 : f32
      %12 = vector.broadcast %cst_9 : f32 to vector<32x128xf32>
      %c0_10 = arith.constant 0 : index
      %c0_11 = arith.constant 0 : index
      %13 = vector.load %arg6[%c0_10, %c0_11] : memref<32x128xf32, #tpu.memory_space<vmem>>, vector<32x128xf32>
      tpu.vector_store %arg6[%c0_10, %c0_11], %12 {strides = array<i32>} : memref<32x128xf32, #tpu.memory_space<vmem>>, vector<32x128xf32>,
    } else {
    }
    %c0 = arith.constant 0 : index
    %c0_1 = arith.constant 0 : index
    %3 = vector.load %arg6[%c0, %c0_1] : memref<32x128xf32, #tpu.memory_space<vmem>>, vector<32x128xf32>
    %c0_2 = arith.constant 0 : index
    %c0_3 = arith.constant 0 : index
    %4 = vector.load %arg3[%c0_2, %c0_3] : memref<32x128xbf16, #tpu.memory_space<vmem>>, vector<32x128xbf16>
    %c0_4 = arith.constant 0 : index
    %c0_5 = arith.constant 0 : index
    %5 = vector.load %arg4[%c0_4, %c0_5] : memref<128x128xbf16, #tpu.memory_space<vmem>>, vector<128x128xbf16>
    %cst = arith.constant dense<0.000000e+00> : vector<32x128xf32>
    %6 = tpu.matmul %4, %5, %cst {dimension_numbers = #tpu.dot_dimension_numbers<[1], [0], [0], [1], [0, 0, 1, 1], [], []>} : vector<32x128xbf16>, vector<128x128xbf16>, vector<32x128xf32> -> vector<32x128xf32>
    %7 = arith.addf %3, %6 : vector<32x128xf32>
    %c0_6 = arith.constant 0 : index
    %c0_7 = arith.constant 0 : index
    %8 = vector.load %arg6[%c0_6, %c0_7] : memref<32x128xf32, #tpu.memory_space<vmem>>, vector<32x128xf32>
    tpu.vector_store %arg6[%c0_6, %c0_7], %7 {strides = array<i32>} : memref<32x128xf32, #tpu.memory_space<vmem>>, vector<32x128xf32>,
    %c1_i32 = arith.constant 1 : i32
    %9 = arith.cmpi eq, %arg2, %c1_i32 : i32
    %10 = arith.extui %9 : i1 to i32
    %c0_i32_8 = arith.constant 0 : i32
    %11 = arith.cmpi ne, %10, %c0_i32_8 : i32
    scf.if %11 {
      %c0_9 = arith.constant 0 : index
      %c0_10 = arith.constant 0 : index
      %12 = vector.load %arg6[%c0_9, %c0_10] : memref<32x128xf32, #tpu.memory_space<vmem>>, vector<32x128xf32>
      %c0_11 = arith.constant 0 : index
      %c0_12 = arith.constant 0 : index
      %13 = vector.load %arg5[%c0_11, %c0_12] : memref<32x128xf32, #tpu.memory_space<vmem>>, vector<32x128xf32>
      tpu.vector_store %arg5[%c0_11, %c0_12], %12 {strides = array<i32>} : memref<32x128xf32, #tpu.memory_space<vmem>>, vector<32x128xf32>,
    } else {
    }
    return
  }
  func.func @transform_0(%arg0: i32, %arg1: i32, %arg2: i32) -> (i32, i32) {
    %c0_i32 = arith.constant 0 : i32
    return %arg0, %arg2 : i32, i32
  }
  func.func @transform_1(%arg0: i32, %arg1: i32, %arg2: i32) -> (i32, i32) {
    %c0_i32 = arith.constant 0 : i32
    return %arg2, %arg1 : i32, i32
  }
  func.func @transform_2(%arg0: i32, %arg1: i32, %arg2: i32) -> (i32, i32) {
    %c0_i32 = arith.constant 0 : i32
    return %arg0, %arg1 : i32, i32
  }
}

</mosaic_0001>

<llo_original>
// kernel: tpu_custom_call.1
$region0: #{tpu_custom_call.1}
  #allocation0 [shape = 'u32[]', space=smem, size = 0x4, offset = 0x4, fixed_abs, tag = 'smem constant byte address 0x4 - core index']
  #allocation1 [shape = 'u32[144,128]{1,0:T(1,128)}', space=vmem, size = 0x12000, scoped, tag = 'internal scratch']
  #allocation2 [shape = 'f32[32,128]{1,0:T(8,128)}', space=vmem, size = 0x4000, scoped, tag = 'scratch operand']
  %s0 = inlined_call_operand.hbm [shape: bf16[64,256], index: 0, kind: input, shape index: {}]
  %s1 = inlined_call_operand.hbm [shape: bf16[256,128], index: 1, kind: input, shape index: {}]
  %s2 = inlined_call_operand.hbm [shape: f32[64,128], index: 2, kind: output, shape index: {}]
  %s3 = sld [smem:[#allocation0]]
  $region57: #{tpu_custom_call.1} parent=0
    _
  %s5 = ssub.s32 1, %s3
  %s6 = scalar_select 0, %s5, %s3
  $region1: #{tpu_custom_call.1} parent=0
    #allocation3 [shape = 'u8[16384]{0}', space=vmem, size = 0x4000, scoped, tag = 'input window, operand 0']
    #allocation4 [shape = 's32[2]{0}', space=sflag, size = 0x8, scoped, tag = 'scoped memory for tpu_custom_call.1']
    #allocation5 [shape = 's32[2]{0}', space=sflag, size = 0x8, scoped, tag = 'scoped memory for tpu_custom_call.1']
    #allocation6 [shape = 'u8[65536]{0}', space=vmem, size = 0x10000, scoped, tag = 'input window, operand 1']
    #allocation7 [shape = 's32[2]{0}', space=sflag, size = 0x8, scoped, tag = 'scoped memory for tpu_custom_call.1']
    #allocation8 [shape = 'u8[32768]{0}', space=vmem, size = 0x8000, scoped, tag = 'output window, operand 0']
    %7 = vsyncpa [#allocation4], 0
    %s8 = scalar_lea.sflag [#allocation4], 1
    %9 = vsyncpa %s8, 0
    %10 = vsyncpa [#allocation7], 0
    %s11 = scalar_lea.sflag [#allocation7], 1
    %12 = vsyncpa %s11, 0
    %13 = vsyncpa [#allocation5], 0
    %s14 = scalar_lea.sflag [#allocation5], 1
    %15 = vsyncpa %s14, 0
    loop: start=0, step=1, limit=6
    $region2: #{tpu_custom_call.1} parent=1 // loop_pre_header
      _
    $region3: #{tpu_custom_call.1} parent=1 // loop_header
      %s17 = sphi 0, %s21
      %p18 = scmp.ge.s32.totalorder %s17, 6
      %s24 = sphi 0, %s43
      %s25 = sphi 0, %s39
      %s26 = sphi 0, %s35
      %s27 = sphi 0, %s24
      %s28 = sphi 0, %s25
      %s29 = sphi 0, %s26
      %s30 = sphi 0, %s27
      %s31 = sphi 0, %s28
      %s32 = sphi 0, %s29
      %s48 = sphi 0, %s50
      %s51 = sphi 0, %s48
      %s52 = sphi 0, %s51
      %s68 = sphi 0, %s52
      %s76 = sphi 0, %s78
      %s79 = sphi 0, %s76
      %s80 = sphi 0, %s79
      %s96 = sphi 0, %s80
      %s104 = sphi 0, %s106
      %s107 = sphi 0, %s104
      %s108 = sphi 0, %s107
      %s124 = sphi 0, %s108
    $region4: #{tpu_custom_call.1} parent=1 // loop_header_branch
      %20 = sbr.rel (%p18) target = $region8
    $region5: #{tpu_custom_call.1} parent=1 // loop_body
      %s22 = ssub.s32 %s17, 1
      %s23 = ssub.s32 %s17, 2
      %s33 = sadd.s32 1, %s26
      %p34 = scmp.ge.s32.totalorder %s33, 2
      %s35 = scalar_select %p34, 0, %s33
      %s36 = sadd.s32 1, %s25
      %s37 = scalar_select %p34, %s36, %s25
      %p38 = scmp.ge.s32.totalorder %s37, 1
      %s39 = scalar_select %p38, 0, %s37
      %s40 = sadd.s32 1, %s24
      %s41 = scalar_select %p38, %s40, %s24
      %p42 = scmp.ge.s32.totalorder %s41, 2
      %s43 = scalar_select %p42, 0, %s41
      %s44 = ssub.s32 %s24, %s43
      %s45 = ssub.s32 %s26, %s35
      %s46 = sor.u32 %s44, %s45
      %p47 = scmp.eq.s32.totalorder %s46, 0
      %s49 = sadd.s32 %s48, 1
      %s50 = scalar_select %p47, %s48, %s49
      %p53 = pneg %p47
      %p54 = scmp.eq.s32.totalorder %s17, 3
      %p55 = por %p53, %p54
      %p56 = scmp.ne.s32.totalorder %s48, %s51
      %p57 = scmp.eq.s32.totalorder %s17, 0
      %p58 = por %p56, %p57
      %p59 = scmp.ne.s32.totalorder %s48, %s51
      %p60 = scmp.eq.s32.totalorder %s22, 3
      %p61 = por %p59, %p60
      %p62 = scmp.ne.s32.totalorder %s51, %s52
      %p63 = scmp.eq.s32.totalorder %s22, 0
      %p64 = por %p62, %p63
      %p65 = scmp.ne.s32.totalorder %s51, %s52
      %p66 = scmp.eq.s32.totalorder %s23, 3
      %p67 = por %p65, %p66
      %p69 = scmp.ne.s32.totalorder %s52, %s68
      %p70 = scmp.eq.s32.totalorder %s23, 0
      %p71 = por %p69, %p70
      %s72 = ssub.s32 %s26, %s35
      %s73 = ssub.s32 %s25, %s39
      %s74 = sor.u32 %s72, %s73
      %p75 = scmp.eq.s32.totalorder %s74, 0
      %s77 = sadd.s32 %s76, 1
      %s78 = scalar_select %p75, %s76, %s77
      %p81 = pneg %p75
      %p82 = scmp.eq.s32.totalorder %s17, 3
      %p83 = por %p81, %p82
      %p84 = scmp.ne.s32.totalorder %s76, %s79
      %p85 = scmp.eq.s32.totalorder %s17, 0
      %p86 = por %p84, %p85
      %p87 = scmp.ne.s32.totalorder %s76, %s79
      %p88 = scmp.eq.s32.totalorder %s22, 3
      %p89 = por %p87, %p88
      %p90 = scmp.ne.s32.totalorder %s79, %s80
      %p91 = scmp.eq.s32.totalorder %s22, 0
      %p92 = por %p90, %p91
      %p93 = scmp.ne.s32.totalorder %s79, %s80
      %p94 = scmp.eq.s32.totalorder %s23, 3
      %p95 = por %p93, %p94
      %p97 = scmp.ne.s32.totalorder %s80, %s96
      %p98 = scmp.eq.s32.totalorder %s23, 0
      %p99 = por %p97, %p98
      %s100 = ssub.s32 %s24, %s43
      %s101 = ssub.s32 %s25, %s39
      %s102 = sor.u32 %s100, %s101
      %p103 = scmp.eq.s32.totalorder %s102, 0
      %s105 = sadd.s32 %s104, 1
      %s106 = scalar_select %p103, %s104, %s105
      %p109 = pneg %p103
      %p110 = scmp.eq.s32.totalorder %s17, 3
      %p111 = por %p109, %p110
      %p112 = scmp.ne.s32.totalorder %s104, %s107
      %p113 = scmp.eq.s32.totalorder %s17, 0
      %p114 = por %p112, %p113
      %p115 = scmp.ne.s32.totalorder %s104, %s107
      %p116 = scmp.eq.s32.totalorder %s22, 3
      %p117 = por %p115, %p116
      %p118 = scmp.ne.s32.totalorder %s107, %s108
      %p119 = scmp.eq.s32.totalorder %s22, 0
      %p120 = por %p118, %p119
      %p121 = scmp.ne.s32.totalorder %s107, %s108
      %p122 = scmp.eq.s32.totalorder %s23, 3
      %p123 = por %p121, %p122
      %p125 = scmp.ne.s32.totalorder %s108, %s124
      %p126 = scmp.eq.s32.totalorder %s23, 0
      %p127 = por %p125, %p126
      %p128 = scmp.le.s32.totalorder 1, %s17
      %p129 = scmp.lt.s32.totalorder %s17, 5
      %p130 = pnand %p128, %p129
      %p131 = pneg %p130
      // Predicated region
      $region9: #{tpu_custom_call.1} parent=5 // pred_check
        _
      $region10: #{tpu_custom_call.1} parent=5 // pred_check_branch
        %133 = sbr.rel (%p130) target = $region12
      $region11: #{tpu_custom_call.1} parent=5 // pred_region
        %s134 = ssub.s32 %s17, 1
      $region12: #{tpu_custom_call.1} parent=5 // pred_fallthru
        _
      %p135 = scmp.lt.s32.totalorder %s17, 4
      // Predicated region
      $region13: #{tpu_custom_call.1} parent=5 // pred_check
        %p136 = pneg %p135
      $region14: #{tpu_custom_call.1} parent=5 // pred_check_branch
        %138 = sbr.rel (%p136) target = $region16
      $region15: #{tpu_custom_call.1} parent=5 // pred_region
        // Predicated region
        $region17: #{tpu_custom_call.1} parent=15 // pred_check
          %p139 = pneg %p58
        $region18: #{tpu_custom_call.1} parent=15 // pred_check_branch
          %141 = sbr.rel (%p139) target = $region20
        $region19: #{tpu_custom_call.1} parent=15 // pred_region
          %s142 = sand.u32 %s48, 1
          %s143 = scalar_lea.sflag [#allocation4], %s142
          %s144 = sand.u32 %s48, 1
          %s145 = smul.addr %s144, 16
          %s146 = scalar_lea.vmem [#allocation3], %s145
          %s147 = smul.u32 4, %s24
          %s149 = ssub.s32 256, 256
          %150 = vsyncadd %s143, %s149
          %s151 = smul.addr %s147, 2
          %s152 = sadd.s32 %s26, %s151
          %s153 = smul.addr %s152, 64
          %s154 = scalar_lea.hbm %s0, %s153
          %s155 = sshll.u32 %s146, 4
          %s156 = int_to_ptr.vmem [resolvable:$true] %s155
          %161 = dma.hbm_to_vmem [thread:$0]  %s154, 256, %s156, %s143, 128, 64, 4
        $region20: #{tpu_custom_call.1} parent=15 // pred_fallthru
          _
        // Predicated region
        $region21: #{tpu_custom_call.1} parent=15 // pred_check
          %p162 = pneg %p86
        $region22: #{tpu_custom_call.1} parent=15 // pred_check_branch
          %164 = sbr.rel (%p162) target = $region24
        $region23: #{tpu_custom_call.1} parent=15 // pred_region
          %s165 = sand.u32 %s76, 1
          %s166 = scalar_lea.sflag [#allocation7], %s165
          %s167 = sand.u32 %s76, 1
          %s168 = smul.addr %s167, 64
          %s169 = scalar_lea.vmem [#allocation6], %s168
          %s170 = smul.u32 16, %s26
          %s172 = ssub.s32 1024, 1024
          %173 = vsyncadd %s166, %s172
          %s174 = sadd.s32 %s25, %s170
          %s175 = smul.addr %s174, 64
          %s176 = scalar_lea.hbm %s1, %s175
          %s177 = sshll.u32 %s169, 4
          %s178 = int_to_ptr.vmem [resolvable:$true] %s177
          %183 = dma.hbm_to_vmem [thread:$0]  %s176, 1024, %s178, %s166, 64, 64, 4
        $region24: #{tpu_custom_call.1} parent=15 // pred_fallthru
          _
      $region16: #{tpu_custom_call.1} parent=5 // pred_fallthru
        _
      %p184 = scmp.le.s32.totalorder 1, %s17
      %p185 = scmp.lt.s32.totalorder %s17, 5
      %p186 = pnand %p184, %p185
      %p187 = pneg %p186
      // Predicated region
      $region25: #{tpu_custom_call.1} parent=5 // pred_check
        _
      $region26: #{tpu_custom_call.1} parent=5 // pred_check_branch
        %189 = sbr.rel (%p186) target = $region28
      $region27: #{tpu_custom_call.1} parent=5 // pred_region
        %s190 = ssub.s32 %s17, 1
        %s191 = sand.u32 %s51, 1
        %s192 = scalar_lea.sflag [#allocation4], %s191
        %s193 = sand.u32 %s51, 1
        %s194 = smul.addr %s193, 16
        %s195 = scalar_lea.vmem [#allocation3], %s194
        // Predicated region
        $region29: #{tpu_custom_call.1} parent=27 // pred_check
          %p196 = pneg %p64
        $region30: #{tpu_custom_call.1} parent=27 // pred_check_branch
          %198 = sbr.rel (%p196) target = $region32
        $region31: #{tpu_custom_call.1} parent=27 // pred_region
          %199 = dma.done %s192, 256
        $region32: #{tpu_custom_call.1} parent=27 // pred_fallthru
          _
        %s200 = sand.u32 %s79, 1
        %s201 = scalar_lea.sflag [#allocation7], %s200
        %s202 = sand.u32 %s79, 1
        %s203 = smul.addr %s202, 64
        %s204 = scalar_lea.vmem [#allocation6], %s203
        // Predicated region
        $region33: #{tpu_custom_call.1} parent=27 // pred_check
          %p205 = pneg %p92
        $region34: #{tpu_custom_call.1} parent=27 // pred_check_branch
          %207 = sbr.rel (%p205) target = $region36
        $region35: #{tpu_custom_call.1} parent=27 // pred_region
          %208 = dma.done %s201, 1024
        $region36: #{tpu_custom_call.1} parent=27 // pred_fallthru
          _
        %s209 = sand.u32 %s51, 1
        %s210 = scalar_lea.sflag [#allocation4], %s209
        %s211 = sand.u32 %s51, 1
        %s212 = smul.addr %s211, 16
        %s213 = scalar_lea.vmem [#allocation3], %s212
        %p214 = pneg %p64
        %p215 = pneg %p61
        %s216 = sand.u32 %s79, 1
        %s217 = scalar_lea.sflag [#allocation7], %s216
        %s218 = sand.u32 %s79, 1
        %s219 = smul.addr %s218, 64
        %s220 = scalar_lea.vmem [#allocation6], %s219
        %p221 = pneg %p92
        %p222 = pneg %p89
        %p223 = pneg %p120
        %p224 = pneg %p117
        %s225 = sand.u32 %s107, 1
        %s226 = scalar_lea.sflag [#allocation5], %s225
        %s227 = sand.u32 %s107, 1
        %s228 = smul.addr %s227, 32
        %s229 = scalar_lea.vmem [#allocation8], %s228
        %s230 = smul.u32 4, %s27
        %s231 = smul.u32 16, %s29
        %s232 = smul.u32 4, %s27
        %p234 = scmp.eq.s32.totalorder %s29, 0
        // Predicated region
        $region37: #{tpu_custom_call.1} parent=27 // pred_check
          %p235 = pneg %p234
        $region38: #{tpu_custom_call.1} parent=27 // pred_check_branch
          %237 = sbr.rel (%p235) target = $region40
        $region39: #{tpu_custom_call.1} parent=27 // pred_region
          %238 = vst [vmem:[#allocation2] sm:$0xff] 0.0
          %239 = vst [vmem:[#allocation2 + $0x8] sm:$0xff] 0.0
          %240 = vst [vmem:[#allocation2 + $0x10] sm:$0xff] 0.0
          %241 = vst [vmem:[#allocation2 + $0x18] sm:$0xff] 0.0
        $region40: #{tpu_custom_call.1} parent=27 // pred_fallthru
          _
        %v242 = vld [vmem:[#allocation2] sm:$0xff]
        %v243 = vld [vmem:[#allocation2 + $0x8] sm:$0xff]
        %v244 = vld [vmem:[#allocation2 + $0x10] sm:$0xff]
        %v245 = vld [vmem:[#allocation2 + $0x18] sm:$0xff]
        %v246 = vld [vmem:[%s195] sm:$0xf]
        %v247 = vld [vmem:[%s195 + $0x4] sm:$0xf]
        %v248 = vld [vmem:[%s195 + $0x8] sm:$0xf]
        %v249 = vld [vmem:[%s195 + $0xc] sm:$0xf]
        %v250 = vld [vmem:[%s204] sm:$0xf]
        %v251 = vld [vmem:[%s204 + $0x4] sm:$0xf]
        %v252 = vld [vmem:[%s204 + $0x8] sm:$0xf]
        %v253 = vld [vmem:[%s204 + $0xc] sm:$0xf]
        %v254 = vld [vmem:[%s204 + $0x10] sm:$0xf]
        %v255 = vld [vmem:[%s204 + $0x14] sm:$0xf]
        %v256 = vld [vmem:[%s204 + $0x18] sm:$0xf]
        %v257 = vld [vmem:[%s204 + $0x1c] sm:$0xf]
        %v258 = vld [vmem:[%s204 + $0x20] sm:$0xf]
        %v259 = vld [vmem:[%s204 + $0x24] sm:$0xf]
        %v260 = vld [vmem:[%s204 + $0x28] sm:$0xf]
        %v261 = vld [vmem:[%s204 + $0x2c] sm:$0xf]
        %v262 = vld [vmem:[%s204 + $0x30] sm:$0xf]
        %v263 = vld [vmem:[%s204 + $0x34] sm:$0xf]
        %v264 = vld [vmem:[%s204 + $0x38] sm:$0xf]
        %v265 = vld [vmem:[%s204 + $0x3c] sm:$0xf]
        %v270 = vunpack.c.l.b16 %v246
        %v271 = vunpack.c.l.b16 %v247
        %v272 = vunpack.c.l.b16 %v248
        %v273 = vunpack.c.l.b16 %v249
        %v274 = vpack.c.b16 %v271, %v270
        %v275 = vpack.c.b16 %v273, %v272
        %v294 = vunpack.c.l.b16 %v250
        %v295 = vunpack.c.l.b16 %v251
        %v296 = vunpack.c.l.b16 %v252
        %v297 = vunpack.c.l.b16 %v253
        %v298 = vunpack.c.l.b16 %v254
        %v299 = vunpack.c.l.b16 %v255
        %v300 = vunpack.c.l.b16 %v256
        %v301 = vunpack.c.l.b16 %v257
        %v302 = vunpack.c.l.b16 %v258
        %v303 = vunpack.c.l.b16 %v259
        %v304 = vunpack.c.l.b16 %v260
        %v305 = vunpack.c.l.b16 %v261
        %v306 = vunpack.c.l.b16 %v262
        %v307 = vunpack.c.l.b16 %v263
        %v308 = vunpack.c.l.b16 %v264
        %v309 = vunpack.c.l.b16 %v265
        %v310 = vpack.c.b16 %v295, %v294
        %v311 = vpack.c.b16 %v297, %v296
        %v312 = vpack.c.b16 %v299, %v298
        %v313 = vpack.c.b16 %v301, %v300
        %v314 = vpack.c.b16 %v303, %v302
        %v315 = vpack.c.b16 %v305, %v304
        %v316 = vpack.c.b16 %v307, %v306
        %v317 = vpack.c.b16 %v309, %v308
        %326 = vmatprep.subr.bf16.mxu0 0
        %327 = vmatpush1.bf16.msra.mxu0 %v310
        %328 = vmatprep.subr.bf16.mxu0 0
        %329 = vmatpush1.bf16.msra.mxu0 %v311
        %330 = vmatprep.subr.bf16.mxu0 0
        %331 = vmatpush1.bf16.msra.mxu0 %v312
        %332 = vmatprep.subr.bf16.mxu0 0
        %333 = vmatpush1.bf16.msra.mxu0 %v313
        %334 = vmatprep.subr.bf16.mxu0 0
        %335 = vmatpush1.bf16.msra.mxu0 %v314
        %336 = vmatprep.subr.bf16.mxu0 0
        %337 = vmatpush1.bf16.msra.mxu0 %v315
        %338 = vmatprep.subr.bf16.mxu0 0
        %339 = vmatpush1.bf16.msra.mxu0 %v316
        %340 = vmatprep.subr.bf16.mxu0 0
        %341 = vmatpush1.bf16.msra.mxu0 %v317
        %342 = vmatprep.subr.bf16.mxu0 0
        %343 = vmatpush1.bf16.msra.mxu0 0
        %344 = vmatprep.subr.bf16.mxu0 0
        %345 = vmatpush1.bf16.msra.mxu0 0
        %346 = vmatprep.subr.bf16.mxu0 0
        %347 = vmatpush1.bf16.msra.mxu0 0
        %348 = vmatprep.subr.bf16.mxu0 0
        %349 = vmatpush1.bf16.msra.mxu0 0
        %350 = vmatprep.subr.bf16.mxu0 0
        %351 = vmatpush1.bf16.msra.mxu0 0
        %352 = vmatprep.subr.bf16.mxu0 0
        %353 = vmatpush1.bf16.msra.mxu0 0
        %354 = vmatprep.subr.bf16.mxu0 0
        %355 = vmatpush1.bf16.msra.mxu0 0
        %356 = vmatprep.subr.bf16.mxu0 0
        %357 = vmatpush1.bf16.msra.mxu0 0
        %358 = vmatprep.mubr.bf16.mxu0 0
        %359 = vmatmul.mubr.bf16.gmra.mrb[0].mxu0 %v274
        %v360 = vpop.f32.mrb[0].mxu0
        %v361 = vadd.f32 0.0, %v360
        %v362 = vpop.f32.mrb[0].mxu0
        %v363 = vpop.f32.mrb[0].mxu0
        %v364 = vadd.f32 0.0, %v363
        %v365 = vpop.f32.mrb[0].mxu0
        %366 = vmatprep.mubr.bf16.mxu0 0
        %367 = vmatmul.mubr.bf16.gmra.mrb[0].mxu0 %v275
        %v368 = vpop.f32.mrb[0].mxu0
        %v369 = vadd.f32 0.0, %v368
        %v370 = vpop.f32.mrb[0].mxu0
        %v371 = vpop.f32.mrb[0].mxu0
        %v372 = vadd.f32 0.0, %v371
        %v373 = vpop.f32.mrb[0].mxu0
        %374 = vdwg.mxu0
        %v375 = vadd.f32 %v242, %v361
        %v376 = vadd.f32 %v243, %v364
        %v377 = vadd.f32 %v244, %v369
        %v378 = vadd.f32 %v245, %v372
        %379 = vst [vmem:[#allocation2] sm:$0xff] %v375
        %380 = vst [vmem:[#allocation2 + $0x8] sm:$0xff] %v376
        %381 = vst [vmem:[#allocation2 + $0x10] sm:$0xff] %v377
        %382 = vst [vmem:[#allocation2 + $0x18] sm:$0xff] %v378
        %p383 = scmp.eq.s32.totalorder %s29, 1
        // Predicated region
        $region41: #{tpu_custom_call.1} parent=27 // pred_check
          %p384 = pneg %p383
        $region42: #{tpu_custom_call.1} parent=27 // pred_check_branch
          %386 = sbr.rel (%p384) target = $region44
        $region43: #{tpu_custom_call.1} parent=27 // pred_region
          %v387 = vld [vmem:[#allocation2] sm:$0xff]
          %v388 = vld [vmem:[#allocation2 + $0x8] sm:$0xff]
          %v389 = vld [vmem:[#allocation2 + $0x10] sm:$0xff]
          %v390 = vld [vmem:[#allocation2 + $0x18] sm:$0xff]
          %391 = vst [vmem:[%s229] sm:$0xff] %v387
          %392 = vst [vmem:[%s229 + $0x8] sm:$0xff] %v388
          %393 = vst [vmem:[%s229 + $0x10] sm:$0xff] %v389
          %394 = vst [vmem:[%s229 + $0x18] sm:$0xff] %v390
        $region44: #{tpu_custom_call.1} parent=27 // pred_fallthru
          _
        %s395 = sand.u32 %s107, 1
        %s396 = scalar_lea.sflag [#allocation5], %s395
        %s397 = sand.u32 %s107, 1
        %s398 = smul.addr %s397, 32
        %s399 = scalar_lea.vmem [#allocation8], %s398
        // Predicated region
        $region45: #{tpu_custom_call.1} parent=27 // pred_check
          %p400 = pneg %p117
        $region46: #{tpu_custom_call.1} parent=27 // pred_check_branch
          %402 = sbr.rel (%p400) target = $region48
        $region47: #{tpu_custom_call.1} parent=27 // pred_region
          %s403 = smul.u32 4, %s27
          %s405 = ssub.s32 512, 512
          %406 = vsyncadd %s396, %s405
          %s407 = sadd.s32 %s28, %s403
          %s408 = smul.addr %s407, 128
          %s409 = scalar_lea.hbm %s2, %s408
          %s410 = sshll.u32 %s399, 4
          %s411 = int_to_ptr.vmem [resolvable:$true] %s410
          %416 = dma.vmem_to_hbm [thread:$0]  %s411, 512, %s409, %s396, 128, 128, 8
        $region48: #{tpu_custom_call.1} parent=27 // pred_fallthru
          _
      $region28: #{tpu_custom_call.1} parent=5 // pred_fallthru
        _
      %p417 = scmp.le.s32.totalorder 2, %s17
      // Predicated region
      $region49: #{tpu_custom_call.1} parent=5 // pred_check
        %p418 = pneg %p417
      $region50: #{tpu_custom_call.1} parent=5 // pred_check_branch
        %420 = sbr.rel (%p418) target = $region52
      $region51: #{tpu_custom_call.1} parent=5 // pred_region
        %s421 = ssub.s32 %s17, 2
        // Predicated region
        $region53: #{tpu_custom_call.1} parent=51 // pred_check
          %p422 = pneg %p123
        $region54: #{tpu_custom_call.1} parent=51 // pred_check_branch
          %424 = sbr.rel (%p422) target = $region56
        $region55: #{tpu_custom_call.1} parent=51 // pred_region
          %s425 = sand.u32 %s108, 1
          %s426 = scalar_lea.sflag [#allocation5], %s425
          %s427 = sand.u32 %s108, 1
          %s428 = smul.addr %s427, 32
          %s429 = scalar_lea.vmem [#allocation8], %s428
          %430 = dma.done %s426, 512
        $region56: #{tpu_custom_call.1} parent=51 // pred_fallthru
          _
      $region52: #{tpu_custom_call.1} parent=5 // pred_fallthru
        _
    $region6: #{tpu_custom_call.1} parent=1 // loop_footer
      %s21 = sadd.s32 1, %s17
    $region7: #{tpu_custom_call.1} parent=1 // loop_footer_branch
      %16 = sbr.rel target = $region3
    $region8: #{tpu_custom_call.1} parent=1 // loop_exit
      _
    %431 = vsyncpa [#allocation4], 1
    %s432 = scalar_lea.sflag [#allocation4], 1
    %433 = vsyncpa %s432, 1
    %434 = vsyncpa [#allocation7], 1
    %s435 = scalar_lea.sflag [#allocation7], 1
    %436 = vsyncpa %s435, 1
    %437 = vsyncpa [#allocation5], 1
    %s438 = scalar_lea.sflag [#allocation5], 1
    %439 = vsyncpa %s438, 1

</llo_original>
